<compile_context>
chip_gen: v7x
topology: tpu7x:2x2x1
jax: 0.10.0
libtpu: 0.0.40
codegen_flags: <defaults>
</compile_context>

<pallas_src>
import functools

import jax
import jax.numpy as jnp
from jax.experimental import pallas as pl
from jax.experimental.pallas import tpu as pltpu


_IN = 26
_HID = 64
_NOUT = 7
_NOUT_PAD = 8       # lane pad 7 -> 8 (full-dim block => legal; unmasked-ish, tiny writeback)
_MAX_TB = 1024      # big tiles amortize per-step overhead on single-TC chips


def _round_up(x, m):
    return ((x + m - 1) // m) * m


def _block_diag(mats):
    """Block-diagonal concat of 2-D matrices (pure jnp, used only at pack time)."""
    if len(mats) == 1:
        return mats[0]
    cols = [m.shape[1] for m in mats]
    rows = []
    for i, m in enumerate(mats):
        pieces = [m if j == i else jnp.zeros((m.shape[0], c), m.dtype)
                  for j, c in enumerate(cols)]
        rows.append(jnp.concatenate(pieces, axis=1))
    return jnp.concatenate(rows, axis=0)


def _q_mlp_kernel(x_ref, w1_ref, b1_ref, w2_ref, b2_ref, w3_ref, b3_ref, o_ref):
    """One batch tile. N packed networks share 3 block-diagonal matmuls."""
    x = x_ref[...]
    h1 = jnp.dot(x, w1_ref[...], preferred_element_type=jnp.float32) + b1_ref[...]
    h1 = jnp.maximum(h1, 0.0)
    h2 = jnp.dot(h1, w2_ref[...], preferred_element_type=jnp.float32) + b2_ref[...]
    h2 = jnp.maximum(h2, 0.0)
    q = jnp.dot(h2, w3_ref[...], preferred_element_type=jnp.float32) + b3_ref[...]
    o_ref[...] = q.astype(o_ref.dtype)


def pack_qnet_params(params_list):
    """Pack N >= 1 Q-networks into ONE fused weight set (block-diagonal hidden
    layers, 8-lane-padded output head). Call once; re-call only when parameters
    change (e.g. after a target-network sync). Per-step forwards do zero
    repacking work."""
    f32 = jnp.float32
    w1 = jnp.concatenate([p["w1"].astype(f32) for p in params_list], axis=1)          # (26, 64N)
    b1 = jnp.concatenate([p["b1"].reshape(1, -1).astype(f32) for p in params_list], 1)  # (1, 64N)
    w2 = _block_diag([p["w2"].astype(f32) for p in params_list])                       # (64N, 64N)
    b2 = jnp.concatenate([p["b2"].reshape(1, -1).astype(f32) for p in params_list], 1)  # (1, 64N)
    pad = _NOUT_PAD - _NOUT
    w3 = _block_diag([jnp.pad(p["w3"].astype(f32), ((0, 0), (0, pad)))
                      for p in params_list])                                            # (64N, 8N)
    b3 = jnp.concatenate([jnp.pad(p["b3"].reshape(1, -1).astype(f32), ((0, 0), (0, pad)))
                          for p in params_list], 1)                                     # (1, 8N)
    return (w1, b1, w2, b2, w3, b3)


@jax.jit
def _q_mlp_pallas(x, w1, b1, w2, b2, w3, b3):
    B, D = x.shape
    n_nets = w3.shape[1] // _NOUT_PAD
    n_out_lanes = n_nets * _NOUT_PAD

    # Batch tile: multiple of 8 (f32 sublane). For B > 8 force >= 2 grid steps
    # so v7x's two TensorCores both get work; cap at _MAX_TB so single-TC
    # v5e/v6e keep a low step count for big training batches.
    if B <= 8:
        TB = _round_up(max(B, 1), 8)
    else:
        TB = min(_MAX_TB, _round_up(pl.cdiv(B, 2), 8))
    B_pad = _round_up(B, TB)
    if B_pad != B:
        x = jnp.pad(x, ((0, B_pad - B), (0, 0)))
    grid = (B_pad // TB,)

    flops = 2 * B_pad * n_nets * (D * _HID + _HID * _HID + _HID * _NOUT_PAD)
    bytes_accessed = 4 * (B_pad * D
                          + w1.size + b1.size + w2.size + b2.size + w3.size + b3.size
                          + B_pad * n_out_lanes)

    out = pl.pallas_call(
        _q_mlp_kernel,
        out_shape=jax.ShapeDtypeStruct((B_pad, n_out_lanes), jnp.float32),
        grid=grid,
        in_specs=[
            pl.BlockSpec((TB, D), lambda i: (i, 0)),      # x tile (pipelined)
            pl.BlockSpec(w1.shape, lambda i: (0, 0)),     # weights/biases resident
            pl.BlockSpec(b1.shape, lambda i: (0, 0)),
            pl.BlockSpec(w2.shape, lambda i: (0, 0)),
            pl.BlockSpec(b2.shape, lambda i: (0, 0)),
            pl.BlockSpec(w3.shape, lambda i: (0, 0)),
            pl.BlockSpec(b3.shape, lambda i: (0, 0)),
        ],
        out_specs=pl.BlockSpec((TB, n_out_lanes), lambda i: (i, 0)),
        compiler_params=pltpu.CompilerParams(
            dimension_semantics=("parallel",),            # dual-TC sharding on v7x
        ),
        cost_estimate=pl.CostEstimate(
            flops=flops, transcendentals=0, bytes_accessed=bytes_accessed),
    )(x, w1, b1, w2, b2, w3, b3)

    # (B_pad, N*8) -> (B, N, 7): strip batch pad, per-net lane pad.
    return out[:B].reshape(B, n_nets, _NOUT_PAD)[..., :_NOUT]


def q_apply(x, packed):
    """x: (B, 26) f32; packed: from pack_qnet_params. Returns (B, N, 7)."""
    return _q_mlp_pallas(x, *packed)


def q_network_forward(x, packed_single):
    """Matches Q_network.forward: (B, 26) -> (B, 7)."""
    return q_apply(x, packed_single)[:, 0]


def ddqn_pair_forward(x, packed_pair):
    """Fused online+target DDQN forward in ONE pallas_call; returns two (B, 7)."""
    q = q_apply(x, packed_pair)
    return q[:, 0], q[:, 1]


def init_params(key):
    """Deterministic synthetic init mirroring nn.Linear shapes.
    nn.Linear(in, out) stores weight (out, in); we keep the transpose (in, out)."""
    ks = jax.random.split(key, 6)

    def linear(kw, kb, fan_in, fan_out):
        bound = 1.0 / jnp.sqrt(fan_in)
        w = jax.random.uniform(kw, (fan_in, fan_out), jnp.float32, -bound, bound)
        b = jax.random.uniform(kb, (1, fan_out), jnp.float32, -bound, bound)
        return w, b

    w1, b1 = linear(ks[0], ks[1], _IN, _HID)
    w2, b2 = linear(ks[2], ks[3], _HID, _HID)
    w3, b3 = linear(ks[4], ks[5], _HID, _NOUT)
    return {"w1": w1, "b1": b1, "w2": w2, "b2": b2, "w3": w3, "b3": b3}


def reference_forward(x, p):
    h1 = jnp.maximum(x @ p["w1"] + p["b1"], 0.0)
    h2 = jnp.maximum(h1 @ p["w2"] + p["b2"], 0.0)
    return h2 @ p["w3"] + p["b3"]


if __name__ == "__main__":
    key = jax.random.PRNGKey(0)
    k_online, k_target, k_x = jax.random.split(key, 3)

    online = init_params(k_online)
    target = init_params(k_target)
    batch = 8
    x = jax.random.normal(k_x, (batch, _IN), jnp.float32)

    # Pack ONCE (hoisted out of the per-step path).
    packed_online = pack_qnet_params([online])
    packed_pair = pack_qnet_params([online, target])

    # Single-network path (matches the PyTorch Q_network.forward).
    q = q_network_forward(x, packed_online)
    q = jax.block_until_ready(q)
    q_ref = reference_forward(x, online)
    assert q.shape == (batch, _NOUT)
    assert jnp.allclose(q, q_ref, atol=1e-4, rtol=1e-4)
    # f32 matmuls -> greedy action selection must agree with the reference.
    assert bool(jnp.all(jnp.argmax(q, -1) == jnp.argmax(q_ref, -1)))

    # Fused online+target path (one kernel launch for both DDQN networks).
    q_on, q_tg = ddqn_pair_forward(x, packed_pair)
    jax.block_until_ready((q_on, q_tg))
    assert q_on.shape == (batch, _NOUT) and q_tg.shape == (batch, _NOUT)
    assert jnp.allclose(q_on, reference_forward(x, online), atol=1e-4, rtol=1e-4)
    assert jnp.allclose(q_tg, reference_forward(x, target), atol=1e-4, rtol=1e-4)

    print("KERNEL_OK")
</pallas_src>

<mosaic_0001>
module attributes {stable_mosaic.version = 11 : i64} {
  func.func @_q_mlp_kernel(%arg0: i32, %arg1: memref<8x26xf32, #tpu.memory_space<vmem>>, %arg2: memref<26x64xf32, #tpu.memory_space<vmem>>, %arg3: memref<1x64xf32, #tpu.memory_space<vmem>>, %arg4: memref<64x64xf32, #tpu.memory_space<vmem>>, %arg5: memref<1x64xf32, #tpu.memory_space<vmem>>, %arg6: memref<64x8xf32, #tpu.memory_space<vmem>>, %arg7: memref<1x8xf32, #tpu.memory_space<vmem>>, %arg8: memref<8x8xf32, #tpu.memory_space<vmem>>) attributes {dimension_semantics = [#tpu.dimension_semantics<parallel>], iteration_bounds = array<i64: 1>, scalar_prefetch = 0 : i64, scratch_operands = 0 : i64, tpu.core_type = #tpu.core_type<tc>, window_params = [{transform_indices = @transform_0, window_bounds = array<i64: 8, 26>}, {pipeline_mode = #tpu.pipeline_mode<synchronous>, transform_indices = @transform_1, window_bounds = array<i64: 26, 64>}, {pipeline_mode = #tpu.pipeline_mode<synchronous>, transform_indices = @transform_2, window_bounds = array<i64: 1, 64>}, {pipeline_mode = #tpu.pipeline_mode<synchronous>, transform_indices = @transform_3, window_bounds = array<i64: 64, 64>}, {pipeline_mode = #tpu.pipeline_mode<synchronous>, transform_indices = @transform_4, window_bounds = array<i64: 1, 64>}, {pipeline_mode = #tpu.pipeline_mode<synchronous>, transform_indices = @transform_5, window_bounds = array<i64: 64, 8>}, {pipeline_mode = #tpu.pipeline_mode<synchronous>, transform_indices = @transform_6, window_bounds = array<i64: 1, 8>}, {transform_indices = @transform_7, window_bounds = array<i64: 8, 8>}]} {
    %c0 = arith.constant 0 : index
    %c0_0 = arith.constant 0 : index
    %0 = vector.load %arg1[%c0, %c0_0] : memref<8x26xf32, #tpu.memory_space<vmem>>, vector<8x26xf32>
    %c0_1 = arith.constant 0 : index
    %c0_2 = arith.constant 0 : index
    %1 = vector.load %arg2[%c0_1, %c0_2] : memref<26x64xf32, #tpu.memory_space<vmem>>, vector<26x64xf32>
    %cst = arith.constant dense<0.000000e+00> : vector<8x64xf32>
    %2 = tpu.matmul %0, %1, %cst {dimension_numbers = #tpu.dot_dimension_numbers<[1], [0], [0], [1], [0, 0, 1, 1], [], []>} : vector<8x26xf32>, vector<26x64xf32>, vector<8x64xf32> -> vector<8x64xf32>
    %c0_3 = arith.constant 0 : index
    %c0_4 = arith.constant 0 : index
    %3 = vector.load %arg3[%c0_3, %c0_4] : memref<1x64xf32, #tpu.memory_space<vmem>>, vector<1x64xf32>
    %4 = vector.broadcast %3 : vector<1x64xf32> to vector<8x64xf32>
    %5 = arith.addf %2, %4 : vector<8x64xf32>
    %cst_5 = arith.constant 0.000000e+00 : f32
    %6 = vector.broadcast %cst_5 : f32 to vector<8x64xf32>
    %7 = arith.maximumf %5, %6 : vector<8x64xf32>
    %c0_6 = arith.constant 0 : index
    %c0_7 = arith.constant 0 : index
    %8 = vector.load %arg4[%c0_6, %c0_7] : memref<64x64xf32, #tpu.memory_space<vmem>>, vector<64x64xf32>
    %cst_8 = arith.constant dense<0.000000e+00> : vector<8x64xf32>
    %9 = tpu.matmul %7, %8, %cst_8 {dimension_numbers = #tpu.dot_dimension_numbers<[1], [0], [0], [1], [0, 0, 1, 1], [], []>} : vector<8x64xf32>, vector<64x64xf32>, vector<8x64xf32> -> vector<8x64xf32>
    %c0_9 = arith.constant 0 : index
    %c0_10 = arith.constant 0 : index
    %10 = vector.load %arg5[%c0_9, %c0_10] : memref<1x64xf32, #tpu.memory_space<vmem>>, vector<1x64xf32>
    %11 = vector.broadcast %10 : vector<1x64xf32> to vector<8x64xf32>
    %12 = arith.addf %9, %11 : vector<8x64xf32>
    %cst_11 = arith.constant 0.000000e+00 : f32
    %13 = vector.broadcast %cst_11 : f32 to vector<8x64xf32>
    %14 = arith.maximumf %12, %13 : vector<8x64xf32>
    %c0_12 = arith.constant 0 : index
    %c0_13 = arith.constant 0 : index
    %15 = vector.load %arg6[%c0_12, %c0_13] : memref<64x8xf32, #tpu.memory_space<vmem>>, vector<64x8xf32>
    %cst_14 = arith.constant dense<0.000000e+00> : vector<8x8xf32>
    %16 = tpu.matmul %14, %15, %cst_14 {dimension_numbers = #tpu.dot_dimension_numbers<[1], [0], [0], [1], [0, 0, 1, 1], [], []>} : vector<8x64xf32>, vector<64x8xf32>, vector<8x8xf32> -> vector<8x8xf32>
    %c0_15 = arith.constant 0 : index
    %c0_16 = arith.constant 0 : index
    %17 = vector.load %arg7[%c0_15, %c0_16] : memref<1x8xf32, #tpu.memory_space<vmem>>, vector<1x8xf32>
    %18 = vector.broadcast %17 : vector<1x8xf32> to vector<8x8xf32>
    %19 = arith.addf %16, %18 : vector<8x8xf32>
    %c0_17 = arith.constant 0 : index
    %c0_18 = arith.constant 0 : index
    %20 = vector.load %arg8[%c0_17, %c0_18] : memref<8x8xf32, #tpu.memory_space<vmem>>, vector<8x8xf32>
    tpu.vector_store %arg8[%c0_17, %c0_18], %19 {strides = array<i32>} : memref<8x8xf32, #tpu.memory_space<vmem>>, vector<8x8xf32>,
    return
  }
  func.func @transform_0(%arg0: i32) -> (i32, i32) {
    %c0_i32 = arith.constant 0 : i32
    %c0_i32_0 = arith.constant 0 : i32
    return %arg0, %c0_i32 : i32, i32
  }
  func.func @transform_1(%arg0: i32) -> (i32, i32) {
    %c0_i32 = arith.constant 0 : i32
    %c0_i32_0 = arith.constant 0 : i32
    %c0_i32_1 = arith.constant 0 : i32
    return %c0_i32, %c0_i32_0 : i32, i32
  }
  func.func @transform_2(%arg0: i32) -> (i32, i32) {
    %c0_i32 = arith.constant 0 : i32
    %c0_i32_0 = arith.constant 0 : i32
    %c0_i32_1 = arith.constant 0 : i32
    return %c0_i32, %c0_i32_0 : i32, i32
  }
  func.func @transform_3(%arg0: i32) -> (i32, i32) {
    %c0_i32 = arith.constant 0 : i32
    %c0_i32_0 = arith.constant 0 : i32
    %c0_i32_1 = arith.constant 0 : i32
    return %c0_i32, %c0_i32_0 : i32, i32
  }
  func.func @transform_4(%arg0: i32) -> (i32, i32) {
    %c0_i32 = arith.constant 0 : i32
    %c0_i32_0 = arith.constant 0 : i32
    %c0_i32_1 = arith.constant 0 : i32
    return %c0_i32, %c0_i32_0 : i32, i32
  }
  func.func @transform_5(%arg0: i32) -> (i32, i32) {
    %c0_i32 = arith.constant 0 : i32
    %c0_i32_0 = arith.constant 0 : i32
    %c0_i32_1 = arith.constant 0 : i32
    return %c0_i32, %c0_i32_0 : i32, i32
  }
  func.func @transform_6(%arg0: i32) -> (i32, i32) {
    %c0_i32 = arith.constant 0 : i32
    %c0_i32_0 = arith.constant 0 : i32
    %c0_i32_1 = arith.constant 0 : i32
    return %c0_i32, %c0_i32_0 : i32, i32
  }
  func.func @transform_7(%arg0: i32) -> (i32, i32) {
    %c0_i32 = arith.constant 0 : i32
    %c0_i32_0 = arith.constant 0 : i32
    return %arg0, %c0_i32 : i32, i32
  }
}

</mosaic_0001>

<llo_original>
// kernel: _q_mlp_pallas.1
$region0: #{_q_mlp_pallas.1}
  #allocation0 [shape = 'u32[]', space=smem, size = 0x4, offset = 0x4, fixed_abs, tag = 'smem constant byte address 0x4 - core index']
  #allocation1 [shape = 'u32[144,128]{1,0:T(1,128)}', space=vmem, size = 0x12000, scoped, tag = 'internal scratch']
  %s0 = inlined_call_operand.vmem [shape: f32[8,26], index: 0, kind: input, shape index: {}]
  %s1 = inlined_call_operand.hbm [shape: f32[26,64], index: 1, kind: input, shape index: {}]
  %s2 = inlined_call_operand.vmem [shape: f32[1,64], index: 2, kind: input, shape index: {}]
  %s3 = inlined_call_operand.vmem [shape: f32[64,64], index: 3, kind: input, shape index: {}]
  %s4 = inlined_call_operand.vmem [shape: f32[1,64], index: 4, kind: input, shape index: {}]
  %s5 = inlined_call_operand.vmem [shape: f32[64,8], index: 5, kind: input, shape index: {}]
  %s6 = inlined_call_operand.vmem [shape: f32[1,8], index: 6, kind: input, shape index: {}]
  %s7 = inlined_call_operand.vmem [shape: f32[8,8], index: 7, kind: output, shape index: {}]
  %s8 = sld [smem:[#allocation0]]
  $region42: #{_q_mlp_pallas.1} parent=0
    _
  %s10 = ssub.s32 1, %s8
  %s11 = scalar_select 0, %s10, %s8
  $region1: #{_q_mlp_pallas.1} parent=0
    #allocation2 [shape = 'u8[16384]{0}', space=vmem, size = 0x4000, scoped, tag = 'input window, operand 1, single buffered']
    #allocation3 [shape = 's32[1]{0}', space=sflag, size = 0x4, scoped, tag = 'scoped memory for _q_mlp_pallas.1']
    %12 = vsyncpa [#allocation3], 0
    // Predicated region
    $region2: #{_q_mlp_pallas.1} parent=1 // pred_check
      _
    $region3: #{_q_mlp_pallas.1} parent=1 // pred_check_branch
      %14 = sbr.rel (0) target = $region5
    $region4: #{_q_mlp_pallas.1} parent=1 // pred_region
      _
    $region5: #{_q_mlp_pallas.1} parent=1 // pred_fallthru
      _
    // Predicated region
    $region6: #{_q_mlp_pallas.1} parent=1 // pred_check
      _
    $region7: #{_q_mlp_pallas.1} parent=1 // pred_check_branch
      %16 = sbr.rel (0) target = $region9
    $region8: #{_q_mlp_pallas.1} parent=1 // pred_region
      %s18 = ssub.s32 512, 512
      %19 = vsyncadd [#allocation3], %s18
      %s20 = sshll.u32 [#allocation2], 4
      %s21 = int_to_ptr.vmem [resolvable:$true] %s20
      %26 = dma.hbm_to_vmem [thread:$0]  %s1, 512, %s21, [#allocation3], 128, 128, 8
    $region9: #{_q_mlp_pallas.1} parent=1 // pred_fallthru
      _
    // Predicated region
    $region10: #{_q_mlp_pallas.1} parent=1 // pred_check
      _
    $region11: #{_q_mlp_pallas.1} parent=1 // pred_check_branch
      %28 = sbr.rel (0) target = $region13
    $region12: #{_q_mlp_pallas.1} parent=1 // pred_region
      _
    $region13: #{_q_mlp_pallas.1} parent=1 // pred_fallthru
      _
    // Predicated region
    $region14: #{_q_mlp_pallas.1} parent=1 // pred_check
      _
    $region15: #{_q_mlp_pallas.1} parent=1 // pred_check_branch
      %30 = sbr.rel (0) target = $region17
    $region16: #{_q_mlp_pallas.1} parent=1 // pred_region
      _
    $region17: #{_q_mlp_pallas.1} parent=1 // pred_fallthru
      _
    // Predicated region
    $region18: #{_q_mlp_pallas.1} parent=1 // pred_check
      _
    $region19: #{_q_mlp_pallas.1} parent=1 // pred_check_branch
      %32 = sbr.rel (0) target = $region21
    $region20: #{_q_mlp_pallas.1} parent=1 // pred_region
      _
    $region21: #{_q_mlp_pallas.1} parent=1 // pred_fallthru
      _
    // Predicated region
    $region22: #{_q_mlp_pallas.1} parent=1 // pred_check
      _
    $region23: #{_q_mlp_pallas.1} parent=1 // pred_check_branch
      %34 = sbr.rel (0) target = $region25
    $region24: #{_q_mlp_pallas.1} parent=1 // pred_region
      _
    $region25: #{_q_mlp_pallas.1} parent=1 // pred_fallthru
      _
    // Predicated region
    $region26: #{_q_mlp_pallas.1} parent=1 // pred_check
      _
    $region27: #{_q_mlp_pallas.1} parent=1 // pred_check_branch
      %36 = sbr.rel (0) target = $region29
    $region28: #{_q_mlp_pallas.1} parent=1 // pred_region
      _
    $region29: #{_q_mlp_pallas.1} parent=1 // pred_fallthru
      _
    // Predicated region
    $region30: #{_q_mlp_pallas.1} parent=1 // pred_check
      _
    $region31: #{_q_mlp_pallas.1} parent=1 // pred_check_branch
      %38 = sbr.rel (0) target = $region33
    $region32: #{_q_mlp_pallas.1} parent=1 // pred_region
      %39 = dma.done [#allocation3], 512
    $region33: #{_q_mlp_pallas.1} parent=1 // pred_fallthru
      _
    %v40 = vld [vmem:[%s0] sm:$0xff]
    %v41 = vld [vmem:[#allocation2] sm:$0xff]
    %v42 = vld [vmem:[#allocation2 + $0x8] sm:$0xff]
    %v43 = vld [vmem:[#allocation2 + $0x10] sm:$0xff]
    %v44 = vld [vmem:[#allocation2 + $0x18] sm:$0x3]
    %v45 = vld [vmem:[%s2] sm:$0x1]
    %v47 = vlaneseq
    %v48 = vshrl.u32 %v47, 7
    %v49 = vsub.s32 0, %v48
    %v50 = vrot.slane %v45, %v49
    %vm52 = vcmask 211968
    %v54 = vsel %vm52, %v40, 0
    %vm56 = vcmask 1041408
    %v58 = vsel %vm56, %v44, 0
    %60 = vmatprep.subr.mxu0 0.0
    %61 = vmatpush1.msra.mxu0 %v41
    %62 = vmatprep.subr.mxu0 0.0
    %63 = vmatpush1.msra.mxu0 %v42
    %64 = vmatprep.subr.mxu0 0.0
    %65 = vmatpush1.msra.mxu0 %v43
    %66 = vmatprep.subr.mxu0 0.0
    %67 = vmatpush1.msra.mxu0 %v58
    %68 = vmatprep.subr.mxu0 0.0
    %69 = vmatpush1.msra.mxu0 0.0
    %70 = vmatprep.subr.mxu0 0.0
    %71 = vmatpush1.msra.mxu0 0.0
    %72 = vmatprep.subr.mxu0 0.0
    %73 = vmatpush1.msra.mxu0 0.0
    %74 = vmatprep.subr.mxu0 0.0
    %75 = vmatpush1.msra.mxu0 0.0
    %76 = vmatprep.subr.mxu0 0.0
    %77 = vmatpush1.msra.mxu0 0.0
    %78 = vmatprep.subr.mxu0 0.0
    %79 = vmatpush1.msra.mxu0 0.0
    %80 = vmatprep.subr.mxu0 0.0
    %81 = vmatpush1.msra.mxu0 0.0
    %82 = vmatprep.subr.mxu0 0.0
    %83 = vmatpush1.msra.mxu0 0.0
    %84 = vmatprep.subr.mxu0 0.0
    %85 = vmatpush1.msra.mxu0 0.0
    %86 = vmatprep.subr.mxu0 0.0
    %87 = vmatpush1.msra.mxu0 0.0
    %88 = vmatprep.subr.mxu0 0.0
    %89 = vmatpush1.msra.mxu0 0.0
    %90 = vmatprep.subr.mxu0 0.0
    %91 = vmatpush1.msra.mxu0 0.0
    %92 = vmatprep.subr.mxu0 0.0
    %93 = vmatpush1.msra.mxu0 0.0
    %94 = vmatprep.subr.mxu0 0.0
    %95 = vmatpush1.msra.mxu0 0.0
    %96 = vmatprep.subr.mxu0 0.0
    %97 = vmatpush1.msra.mxu0 0.0
    %98 = vmatprep.subr.mxu0 0.0
    %99 = vmatpush1.msra.mxu0 0.0
    %100 = vmatprep.subr.mxu0 0.0
    %101 = vmatpush1.msra.mxu0 0.0
    %102 = vmatprep.subr.mxu0 0.0
    %103 = vmatpush1.msra.mxu0 0.0
    %104 = vmatprep.subr.mxu0 0.0
    %105 = vmatpush1.msra.mxu0 0.0
    %106 = vmatprep.subr.mxu0 0.0
    %107 = vmatpush1.msra.mxu0 0.0
    %108 = vmatprep.subr.mxu0 0.0
    %109 = vmatpush1.msra.mxu0 0.0
    %110 = vmatprep.subr.mxu0 0.0
    %111 = vmatpush1.msra.mxu0 0.0
    %112 = vmatprep.subr.mxu0 0.0
    %113 = vmatpush1.msra.mxu0 0.0
    %114 = vmatprep.subr.mxu0 0.0
    %115 = vmatpush1.msra.mxu0 0.0
    %116 = vmatprep.subr.mxu0 0.0
    %117 = vmatpush1.msra.mxu0 0.0
    %118 = vmatprep.subr.mxu0 0.0
    %119 = vmatpush1.msra.mxu0 0.0
    %120 = vmatprep.subr.mxu0 0.0
    %121 = vmatpush1.msra.mxu0 0.0
    %122 = vmatprep.subr.mxu0 0.0
    %123 = vmatpush1.msra.mxu0 0.0
    %124 = vmatprep.mubr.f32.mxu0 0.0
    %125 = vmatmul.mubr.f32.gmra.mrb[0].mxu0 %v54
    %v126 = vpop.f32.mrb[0].mxu0
    %v127 = vadd.f32 %v50, %v126
    %v128 = vpop.f32.mrb[0].mxu0
    %129 = vdwg.mxu0
    %v130 = vmax.f32 %v127, 0.0
    %v131 = vld [vmem:[%s3] sm:$0xff]
    %v132 = vld [vmem:[%s3 + $0x8] sm:$0xff]
    %v133 = vld [vmem:[%s3 + $0x10] sm:$0xff]
    %v134 = vld [vmem:[%s3 + $0x18] sm:$0xff]
    %v135 = vld [vmem:[%s3 + $0x20] sm:$0xff]
    %v136 = vld [vmem:[%s3 + $0x28] sm:$0xff]
    %v137 = vld [vmem:[%s3 + $0x30] sm:$0xff]
    %v138 = vld [vmem:[%s3 + $0x38] sm:$0xff]
    %v139 = vld [vmem:[%s4] sm:$0x1]
    %v141 = vlaneseq
    %v142 = vshrl.u32 %v141, 7
    %v143 = vsub.s32 0, %v142
    %v144 = vrot.slane %v139, %v143
    %vm146 = vcmask 523264
    %v148 = vsel %vm146, %v130, 0
    %150 = vmatprep.subr.mxu0 0.0
    %151 = vmatpush1.msra.mxu0 %v131
    %152 = vmatprep.subr.mxu0 0.0
    %153 = vmatpush1.msra.mxu0 %v132
    %154 = vmatprep.subr.mxu0 0.0
    %155 = vmatpush1.msra.mxu0 %v133
    %156 = vmatprep.subr.mxu0 0.0
    %157 = vmatpush1.msra.mxu0 %v134
    %158 = vmatprep.subr.mxu0 0.0
    %159 = vmatpush1.msra.mxu0 %v135
    %160 = vmatprep.subr.mxu0 0.0
    %161 = vmatpush1.msra.mxu0 %v136
    %162 = vmatprep.subr.mxu0 0.0
    %163 = vmatpush1.msra.mxu0 %v137
    %164 = vmatprep.subr.mxu0 0.0
    %165 = vmatpush1.msra.mxu0 %v138
    %166 = vmatprep.subr.mxu0 0.0
    %167 = vmatpush1.msra.mxu0 0.0
    %168 = vmatprep.subr.mxu0 0.0
    %169 = vmatpush1.msra.mxu0 0.0
    %170 = vmatprep.subr.mxu0 0.0
    %171 = vmatpush1.msra.mxu0 0.0
    %172 = vmatprep.subr.mxu0 0.0
    %173 = vmatpush1.msra.mxu0 0.0
    %174 = vmatprep.subr.mxu0 0.0
    %175 = vmatpush1.msra.mxu0 0.0
    %176 = vmatprep.subr.mxu0 0.0
    %177 = vmatpush1.msra.mxu0 0.0
    %178 = vmatprep.subr.mxu0 0.0
    %179 = vmatpush1.msra.mxu0 0.0
    %180 = vmatprep.subr.mxu0 0.0
    %181 = vmatpush1.msra.mxu0 0.0
    %182 = vmatprep.subr.mxu0 0.0
    %183 = vmatpush1.msra.mxu0 0.0
    %184 = vmatprep.subr.mxu0 0.0
    %185 = vmatpush1.msra.mxu0 0.0
    %186 = vmatprep.subr.mxu0 0.0
    %187 = vmatpush1.msra.mxu0 0.0
    %188 = vmatprep.subr.mxu0 0.0
    %189 = vmatpush1.msra.mxu0 0.0
    %190 = vmatprep.subr.mxu0 0.0
    %191 = vmatpush1.msra.mxu0 0.0
    %192 = vmatprep.subr.mxu0 0.0
    %193 = vmatpush1.msra.mxu0 0.0
    %194 = vmatprep.subr.mxu0 0.0
    %195 = vmatpush1.msra.mxu0 0.0
    %196 = vmatprep.subr.mxu0 0.0
    %197 = vmatpush1.msra.mxu0 0.0
    %198 = vmatprep.subr.mxu0 0.0
    %199 = vmatpush1.msra.mxu0 0.0
    %200 = vmatprep.subr.mxu0 0.0
    %201 = vmatpush1.msra.mxu0 0.0
    %202 = vmatprep.subr.mxu0 0.0
    %203 = vmatpush1.msra.mxu0 0.0
    %204 = vmatprep.subr.mxu0 0.0
    %205 = vmatpush1.msra.mxu0 0.0
    %206 = vmatprep.subr.mxu0 0.0
    %207 = vmatpush1.msra.mxu0 0.0
    %208 = vmatprep.subr.mxu0 0.0
    %209 = vmatpush1.msra.mxu0 0.0
    %210 = vmatprep.subr.mxu0 0.0
    %211 = vmatpush1.msra.mxu0 0.0
    %212 = vmatprep.subr.mxu0 0.0
    %213 = vmatpush1.msra.mxu0 0.0
    %214 = vmatprep.mubr.f32.mxu0 0.0
    %215 = vmatmul.mubr.f32.gmra.mrb[0].mxu0 %v148
    %v216 = vpop.f32.mrb[0].mxu0
    %v217 = vadd.f32 %v144, %v216
    %v218 = vpop.f32.mrb[0].mxu0
    %219 = vdwg.mxu0
    %v220 = vmax.f32 %v217, 0.0
    %v221 = vld [vmem:[%s5] sm:$0xff]
    %v222 = vld [vmem:[%s5 + $0x8] sm:$0xff]
    %v223 = vld [vmem:[%s5 + $0x10] sm:$0xff]
    %v224 = vld [vmem:[%s5 + $0x18] sm:$0xff]
    %v225 = vld [vmem:[%s5 + $0x20] sm:$0xff]
    %v226 = vld [vmem:[%s5 + $0x28] sm:$0xff]
    %v227 = vld [vmem:[%s5 + $0x30] sm:$0xff]
    %v228 = vld [vmem:[%s5 + $0x38] sm:$0xff]
    %v229 = vld [vmem:[%s6] sm:$0x1]
    %v231 = vlaneseq
    %v232 = vshrl.u32 %v231, 7
    %v233 = vsub.s32 0, %v232
    %v234 = vrot.slane %v229, %v233
    %v237 = vsel %vm146, %v220, 0
    %239 = vmatprep.subr.mxu0 0.0
    %240 = vmatpush1.msra.mxu0 %v221
    %241 = vmatprep.subr.mxu0 0.0
    %242 = vmatpush1.msra.mxu0 %v222
    %243 = vmatprep.subr.mxu0 0.0
    %244 = vmatpush1.msra.mxu0 %v223
    %245 = vmatprep.subr.mxu0 0.0
    %246 = vmatpush1.msra.mxu0 %v224
    %247 = vmatprep.subr.mxu0 0.0
    %248 = vmatpush1.msra.mxu0 %v225
    %249 = vmatprep.subr.mxu0 0.0
    %250 = vmatpush1.msra.mxu0 %v226
    %251 = vmatprep.subr.mxu0 0.0
    %252 = vmatpush1.msra.mxu0 %v227
    %253 = vmatprep.subr.mxu0 0.0
    %254 = vmatpush1.msra.mxu0 %v228
    %255 = vmatprep.subr.mxu0 0.0
    %256 = vmatpush1.msra.mxu0 0.0
    %257 = vmatprep.subr.mxu0 0.0
    %258 = vmatpush1.msra.mxu0 0.0
    %259 = vmatprep.subr.mxu0 0.0
    %260 = vmatpush1.msra.mxu0 0.0
    %261 = vmatprep.subr.mxu0 0.0
    %262 = vmatpush1.msra.mxu0 0.0
    %263 = vmatprep.subr.mxu0 0.0
    %264 = vmatpush1.msra.mxu0 0.0
    %265 = vmatprep.subr.mxu0 0.0
    %266 = vmatpush1.msra.mxu0 0.0
    %267 = vmatprep.subr.mxu0 0.0
    %268 = vmatpush1.msra.mxu0 0.0
    %269 = vmatprep.subr.mxu0 0.0
    %270 = vmatpush1.msra.mxu0 0.0
    %271 = vmatprep.subr.mxu0 0.0
    %272 = vmatpush1.msra.mxu0 0.0
    %273 = vmatprep.subr.mxu0 0.0
    %274 = vmatpush1.msra.mxu0 0.0
    %275 = vmatprep.subr.mxu0 0.0
    %276 = vmatpush1.msra.mxu0 0.0
    %277 = vmatprep.subr.mxu0 0.0
    %278 = vmatpush1.msra.mxu0 0.0
    %279 = vmatprep.subr.mxu0 0.0
    %280 = vmatpush1.msra.mxu0 0.0
    %281 = vmatprep.subr.mxu0 0.0
    %282 = vmatpush1.msra.mxu0 0.0
    %283 = vmatprep.subr.mxu0 0.0
    %284 = vmatpush1.msra.mxu0 0.0
    %285 = vmatprep.subr.mxu0 0.0
    %286 = vmatpush1.msra.mxu0 0.0
    %287 = vmatprep.subr.mxu0 0.0
    %288 = vmatpush1.msra.mxu0 0.0
    %289 = vmatprep.subr.mxu0 0.0
    %290 = vmatpush1.msra.mxu0 0.0
    %291 = vmatprep.subr.mxu0 0.0
    %292 = vmatpush1.msra.mxu0 0.0
    %293 = vmatprep.subr.mxu0 0.0
    %294 = vmatpush1.msra.mxu0 0.0
    %295 = vmatprep.subr.mxu0 0.0
    %296 = vmatpush1.msra.mxu0 0.0
    %297 = vmatprep.subr.mxu0 0.0
    %298 = vmatpush1.msra.mxu0 0.0
    %299 = vmatprep.subr.mxu0 0.0
    %300 = vmatpush1.msra.mxu0 0.0
    %301 = vmatprep.subr.mxu0 0.0
    %302 = vmatpush1.msra.mxu0 0.0
    %303 = vmatprep.mubr.f32.mxu0 0.0
    %304 = vmatmul.mubr.f32.gmra.mrb[0].mxu0 %v237
    %v305 = vpop.f32.mrb[0].mxu0
    %v306 = vadd.f32 %v234, %v305
    %v307 = vpop.f32.mrb[0].mxu0
    %308 = vdwg.mxu0
    %vm309 = vcmask 64512
    %310 = vst.msk [vmem:[%s7] sm:$0xff] %vm309, %v306
    // Predicated region
    $region34: #{_q_mlp_pallas.1} parent=1 // pred_check
      _
    $region35: #{_q_mlp_pallas.1} parent=1 // pred_check_branch
      %312 = sbr.rel (0) target = $region37
    $region36: #{_q_mlp_pallas.1} parent=1 // pred_region
      _
    $region37: #{_q_mlp_pallas.1} parent=1 // pred_fallthru
      _
    // Predicated region
    $region38: #{_q_mlp_pallas.1} parent=1 // pred_check
      _
    $region39: #{_q_mlp_pallas.1} parent=1 // pred_check_branch
      %314 = sbr.rel (0) target = $region41
    $region40: #{_q_mlp_pallas.1} parent=1 // pred_region
      _
    $region41: #{_q_mlp_pallas.1} parent=1 // pred_fallthru
      _
    %315 = vsyncpa [#allocation3], 1

</llo_original>
